<compile_context>
chip_gen: v5e
topology: v5e:2x2
jax: 0.10.0
libtpu: 0.0.40
codegen_flags: <defaults>
</compile_context>

<pallas_src>
import jax
import jax.numpy as jnp
from jax import lax
from jax.experimental import pallas as pl
from jax.experimental.pallas import tpu as pltpu


def _cdiv(a, b):
    return -(-a // b)


def _round_up(a, b):
    return _cdiv(a, b) * b


def _make_conf_kernel(C, C_pad, tile_m, tiles_per_part, dhw):
    def _conf_kernel(pred_ref, tgt_ref, conf_ref):
        # pred_ref: (C, TM) logits in their native dtype
        # tgt_ref : (1, TM) int32 labels
        # conf_ref: (C_pad, C_pad) f32 accumulator, conf[pred_cls, tgt_cls]
        i = pl.program_id(2)

        @pl.when(i == 0)
        def _init():
            conf_ref[...] = jnp.zeros_like(conf_ref)

        x = pred_ref[...]                                        # (C, TM)
        cls = lax.broadcasted_iota(jnp.int32, (C, tile_m), 0)    # (C, TM)

        # First-index argmax over the class (sublane) axis — matches
        # torch.argmax / np.argmax tie-breaking.
        max_val = jnp.max(x, axis=0, keepdims=True)              # (1, TM)
        pred_lbl = jnp.min(jnp.where(x == max_val, cls, C),
                           axis=0, keepdims=True)                # (1, TM)

        # Mask lanes past the end of the (possibly ragged) spatial axis and
        # lanes belonging to overrun (clamped) tiles.
        p = pl.program_id(1)
        start = (p * tiles_per_part + i) * tile_m
        lane = lax.broadcasted_iota(jnp.int32, (1, tile_m), 1)
        valid = (start + lane) < dhw                             # (1, TM)

        tgt = tgt_ref[...]                                       # (1, TM)
        cls_pad = lax.broadcasted_iota(jnp.int32, (C_pad, tile_m), 0)
        pred_oh = ((pred_lbl == cls_pad) & valid).astype(jnp.bfloat16)
        tgt_oh = ((tgt == cls_pad) & valid).astype(jnp.bfloat16)

        # Confusion-matrix update on the (otherwise idle) MXU:
        #   conf[a, b] += sum_m pred_oh[a, m] * tgt_oh[b, m]
        conf_ref[...] += lax.dot_general(
            pred_oh, tgt_oh, (((1,), (1,)), ((), ())),
            preferred_element_type=jnp.float32)

    return _conf_kernel


def loss_3d_f1_score(pred_tensor, target_tensor, *, tile_m=4096):
    """pred_tensor: (N, C, D, H, W) float logits; target_tensor: (N, D, H, W) int labels."""
    N, C = pred_tensor.shape[0], pred_tensor.shape[1]
    dhw = 1
    for s in pred_tensor.shape[2:]:
        dhw *= s

    # Free views — no transpose is materialized in HBM.
    pred_v = pred_tensor.reshape(N, C, dhw)                 # native dtype
    tgt_v = target_tensor.reshape(N, 1, dhw).astype(jnp.int32)

    # Tile sizing: as large as requested (multiple of 128), clamped to the
    # padded spatial extent and to a modest per-input VMEM budget so the
    # double-buffered pipeline fits even v5e's 16 MiB scoped default.
    itemsize = jnp.dtype(pred_v.dtype).itemsize
    tile = max(128, min(_round_up(int(tile_m), 128), _round_up(dhw, 128)))
    while tile > 512 and C * tile * itemsize * 2 > (6 << 20):
        tile //= 2
    num_tiles = _cdiv(dhw, tile)

    # Split the spatial-tile axis two ways so v7x's two TensorCores (and the
    # megacore on v5e/v6e when N == 1) both get work; partial confusion
    # matrices are summed in JAX.
    P = 2 if num_tiles >= 2 else 1
    tiles_per_part = _cdiv(num_tiles, P)

    C_pad = _round_up(C, 8)     # sublane/MXU-friendly confusion-matrix dims

    def _in_map(n, p, i):
        # Clamp overrun tiles onto the last real tile; their lanes are masked
        # out in-kernel so they contribute nothing.
        t = jnp.minimum(p * tiles_per_part + i, num_tiles - 1)
        return (n, 0, t)

    def _out_map(n, p, i):
        return (n, p, 0, 0)

    kernel = _make_conf_kernel(C, C_pad, tile, tiles_per_part, dhw)

    conf_parts = pl.pallas_call(
        kernel,
        out_shape=jax.ShapeDtypeStruct((N, P, C_pad, C_pad), jnp.float32),
        grid_spec=pltpu.PrefetchScalarGridSpec(
            num_scalar_prefetch=0,
            grid=(N, P, tiles_per_part),
            in_specs=[
                pl.BlockSpec((None, C, tile), _in_map),
                pl.BlockSpec((None, 1, tile), _in_map),
            ],
            out_specs=pl.BlockSpec((None, None, C_pad, C_pad), _out_map),
        ),
        compiler_params=pltpu.CompilerParams(
            dimension_semantics=("parallel", "parallel", "arbitrary")),
    )(pred_v, tgt_v)

    # Tiny JAX epilogue: reduce partials, derive macro F1.
    conf = jnp.sum(conf_parts, axis=(0, 1))[:C, :C]          # (C, C) f32
    tp = jnp.diagonal(conf)
    pc = jnp.sum(conf, axis=1)      # predicted counts (rows = pred class)
    tc = jnp.sum(conf, axis=0)      # target counts   (cols = target class)
    fp = pc - tp
    fn = tc - tp

    # sklearn macro F1: average only over labels present in target or pred.
    present = (pc + tc) > 0.0
    denom = 2.0 * tp + fp + fn
    f1_per_class = jnp.where(denom > 0.0, 2.0 * tp / jnp.maximum(denom, 1.0), 0.0)
    num_present = jnp.sum(present.astype(jnp.float32))
    f1 = jnp.sum(jnp.where(present, f1_per_class, 0.0)) / jnp.maximum(num_present, 1.0)

    # TODO(synk): torch wraps the result with requires_grad=True but it is a
    # detached leaf (no grad flows to inputs); we just return the scalar value.
    return (1.0 - f1).astype(jnp.float32)


if __name__ == "__main__":
    key = jax.random.PRNGKey(0)
    k_pred, k_tgt = jax.random.split(key)

    # DHW = 5*16*16 = 1280 with tile_m=512 exercises: multi-tile accumulation,
    # the 2-way parallel split, a ragged last tile and one overrun tile.
    N, C, D, H, W = 2, 4, 5, 16, 16
    pred_tensor = jax.random.normal(k_pred, (N, C, D, H, W), dtype=jnp.float32)
    target_tensor = jax.random.randint(k_tgt, (N, D, H, W), 0, C, dtype=jnp.int32)

    loss = loss_3d_f1_score(pred_tensor, target_tensor, tile_m=512)
    loss = jax.block_until_ready(loss)

    # Lightweight pure-JAX reference (same math, no Pallas) for sanity.
    pred_lbl = jnp.argmax(pred_tensor, axis=1).reshape(-1)
    tgt = target_tensor.reshape(-1)
    cls = jnp.arange(C)
    tp_r = jnp.sum((pred_lbl[None, :] == cls[:, None]) & (tgt[None, :] == cls[:, None]), axis=1)
    pc_r = jnp.sum(pred_lbl[None, :] == cls[:, None], axis=1)
    tc_r = jnp.sum(tgt[None, :] == cls[:, None], axis=1)
    denom_r = 2 * tp_r + (pc_r - tp_r) + (tc_r - tp_r)
    present_r = (pc_r + tc_r) > 0
    f1_r = jnp.where(denom_r > 0, 2.0 * tp_r / jnp.maximum(denom_r, 1), 0.0)
    ref = 1.0 - jnp.sum(jnp.where(present_r, f1_r, 0.0)) / jnp.maximum(
        jnp.sum(present_r.astype(jnp.float32)), 1.0)

    assert jnp.allclose(loss, ref, atol=1e-6), (loss, ref)
    print("KERNEL_OK")
</pallas_src>

<mosaic_0001>
module attributes {stable_mosaic.version = 11 : i64} {
  func.func @_conf_kernel(%arg0: i32, %arg1: i32, %arg2: i32, %arg3: memref<1x4x512xf32, #tpu.memory_space<vmem>>, %arg4: memref<1x1x512xi32, #tpu.memory_space<vmem>>, %arg5: memref<1x1x8x8xf32, #tpu.memory_space<vmem>>) attributes {dimension_semantics = [#tpu.dimension_semantics<parallel>, #tpu.dimension_semantics<parallel>, #tpu.dimension_semantics<arbitrary>], iteration_bounds = array<i64: 2, 2, 2>, scalar_prefetch = 0 : i64, scratch_operands = 0 : i64, tpu.core_type = #tpu.core_type<tc>, window_params = [{transform_indices = @transform_0, window_bounds = array<i64: 1, 4, 512>}, {transform_indices = @transform_1, window_bounds = array<i64: 1, 1, 512>}, {transform_indices = @transform_2, window_bounds = array<i64: 1, 1, 8, 8>}]} {
    %c0_i32 = arith.constant 0 : i32
    %0 = arith.cmpi eq, %arg2, %c0_i32 : i32
    %1 = arith.extui %0 : i1 to i32
    %c0_i32_0 = arith.constant 0 : i32
    %2 = arith.cmpi ne, %1, %c0_i32_0 : i32
    scf.if %2 {
      %cst_16 = arith.constant 0.000000e+00 : f32
      %46 = vector.broadcast %cst_16 : f32 to vector<8x8xf32>
      %c0_17 = arith.constant 0 : index
      %c0_18 = arith.constant 0 : index
      %c0_19 = arith.constant 0 : index
      %c0_20 = arith.constant 0 : index
      %47 = vector.load %arg5[%c0_17, %c0_18, %c0_19, %c0_20] : memref<1x1x8x8xf32, #tpu.memory_space<vmem>>, vector<1x1x8x8xf32>
      %48 = vector.shape_cast %47 : vector<1x1x8x8xf32> to vector<8x8xf32>
      %49 = vector.shape_cast %46 : vector<8x8xf32> to vector<1x1x8x8xf32>
      tpu.vector_store %arg5[%c0_17, %c0_18, %c0_19, %c0_20], %49 {strides = array<i32>} : memref<1x1x8x8xf32, #tpu.memory_space<vmem>>, vector<1x1x8x8xf32>,
    } else {
    }
    %c0 = arith.constant 0 : index
    %c0_1 = arith.constant 0 : index
    %c0_2 = arith.constant 0 : index
    %3 = vector.load %arg3[%c0, %c0_1, %c0_2] : memref<1x4x512xf32, #tpu.memory_space<vmem>>, vector<1x4x512xf32>
    %4 = vector.shape_cast %3 : vector<1x4x512xf32> to vector<4x512xf32>
    %5 = tpu.iota {dimensions = array<i32: 0>} : vector<4x512xi32>
    %cst = arith.constant dense<0xFF800000> : vector<512xf32>
    %6 = vector.multi_reduction <maximumf>, %4, %cst [0] : vector<4x512xf32> to vector<512xf32>
    %7 = vector.shape_cast %6 : vector<512xf32> to vector<1x512xf32>
    %8 = vector.broadcast %7 : vector<1x512xf32> to vector<4x512xf32>
    %9 = arith.cmpf oeq, %4, %8 : vector<4x512xf32>
    %c4_i32 = arith.constant 4 : i32
    %10 = vector.broadcast %c4_i32 : i32 to vector<4x512xi32>
    %11 = arith.select %9, %5, %10 : vector<4x512xi1>, vector<4x512xi32>
    %cst_3 = arith.constant dense<2147483647> : vector<512xi32>
    %12 = vector.multi_reduction <minsi>, %11, %cst_3 [0] : vector<4x512xi32> to vector<512xi32>
    %13 = vector.shape_cast %12 : vector<512xi32> to vector<1x512xi32>
    %c2_i32 = arith.constant 2 : i32
    %14 = arith.muli %arg1, %c2_i32 : i32
    %15 = arith.addi %14, %arg2 : i32
    %c512_i32 = arith.constant 512 : i32
    %16 = arith.muli %15, %c512_i32 : i32
    %17 = tpu.iota {dimensions = array<i32: 1>} : vector<1x512xi32>
    %18 = vector.broadcast %16 : i32 to vector<1x512xi32>
    %19 = arith.addi %18, %17 : vector<1x512xi32>
    %c1280_i32 = arith.constant 1280 : i32
    %20 = vector.broadcast %c1280_i32 : i32 to vector<1x512xi32>
    %21 = arith.cmpi slt, %19, %20 : vector<1x512xi32>
    %c0_4 = arith.constant 0 : index
    %c0_5 = arith.constant 0 : index
    %c0_6 = arith.constant 0 : index
    %22 = vector.load %arg4[%c0_4, %c0_5, %c0_6] : memref<1x1x512xi32, #tpu.memory_space<vmem>>, vector<1x1x512xi32>
    %23 = vector.shape_cast %22 : vector<1x1x512xi32> to vector<1x512xi32>
    %24 = tpu.iota {dimensions = array<i32: 0>} : vector<8x512xi32>
    %25 = vector.broadcast %13 : vector<1x512xi32> to vector<8x512xi32>
    %26 = arith.cmpi eq, %25, %24 : vector<8x512xi32>
    %27 = vector.broadcast %21 : vector<1x512xi1> to vector<8x512xi1>
    %28 = arith.andi %26, %27 : vector<8x512xi1>
    %29 = arith.extui %28 : vector<8x512xi1> to vector<8x512xi32>
    %30 = arith.sitofp %29 : vector<8x512xi32> to vector<8x512xf32>
    %31 = arith.truncf %30 : vector<8x512xf32> to vector<8x512xbf16>
    %32 = vector.broadcast %23 : vector<1x512xi32> to vector<8x512xi32>
    %33 = arith.cmpi eq, %32, %24 : vector<8x512xi32>
    %34 = vector.broadcast %21 : vector<1x512xi1> to vector<8x512xi1>
    %35 = arith.andi %33, %34 : vector<8x512xi1>
    %36 = arith.extui %35 : vector<8x512xi1> to vector<8x512xi32>
    %37 = arith.sitofp %36 : vector<8x512xi32> to vector<8x512xf32>
    %38 = arith.truncf %37 : vector<8x512xf32> to vector<8x512xbf16>
    %c0_7 = arith.constant 0 : index
    %c0_8 = arith.constant 0 : index
    %c0_9 = arith.constant 0 : index
    %c0_10 = arith.constant 0 : index
    %39 = vector.load %arg5[%c0_7, %c0_8, %c0_9, %c0_10] : memref<1x1x8x8xf32, #tpu.memory_space<vmem>>, vector<1x1x8x8xf32>
    %40 = vector.shape_cast %39 : vector<1x1x8x8xf32> to vector<8x8xf32>
    %cst_11 = arith.constant dense<0.000000e+00> : vector<8x8xf32>
    %41 = tpu.matmul %31, %38, %cst_11 {dimension_numbers = #tpu.dot_dimension_numbers<[1], [1], [0], [0], [0, 0, 1, 0], [], []>} : vector<8x512xbf16>, vector<8x512xbf16>, vector<8x8xf32> -> vector<8x8xf32>
    %42 = arith.addf %40, %41 : vector<8x8xf32>
    %c0_12 = arith.constant 0 : index
    %c0_13 = arith.constant 0 : index
    %c0_14 = arith.constant 0 : index
    %c0_15 = arith.constant 0 : index
    %43 = vector.load %arg5[%c0_12, %c0_13, %c0_14, %c0_15] : memref<1x1x8x8xf32, #tpu.memory_space<vmem>>, vector<1x1x8x8xf32>
    %44 = vector.shape_cast %43 : vector<1x1x8x8xf32> to vector<8x8xf32>
    %45 = vector.shape_cast %42 : vector<8x8xf32> to vector<1x1x8x8xf32>
    tpu.vector_store %arg5[%c0_12, %c0_13, %c0_14, %c0_15], %45 {strides = array<i32>} : memref<1x1x8x8xf32, #tpu.memory_space<vmem>>, vector<1x1x8x8xf32>,
    return
  }
  func.func @transform_0(%arg0: i32, %arg1: i32, %arg2: i32) -> (i32, i32, i32) {
    %c2_i32 = arith.constant 2 : i32
    %0 = arith.muli %arg1, %c2_i32 : i32
    %1 = arith.addi %0, %arg2 : i32
    %c2_i32_0 = arith.constant 2 : i32
    %2 = arith.minsi %1, %c2_i32_0 : i32
    %c0_i32 = arith.constant 0 : i32
    %c0_i32_1 = arith.constant 0 : i32
    return %arg0, %c0_i32, %2 : i32, i32, i32
  }
  func.func @transform_1(%arg0: i32, %arg1: i32, %arg2: i32) -> (i32, i32, i32) {
    %c2_i32 = arith.constant 2 : i32
    %0 = arith.muli %arg1, %c2_i32 : i32
    %1 = arith.addi %0, %arg2 : i32
    %c2_i32_0 = arith.constant 2 : i32
    %2 = arith.minsi %1, %c2_i32_0 : i32
    %c0_i32 = arith.constant 0 : i32
    %c0_i32_1 = arith.constant 0 : i32
    return %arg0, %c0_i32, %2 : i32, i32, i32
  }
  func.func @transform_2(%arg0: i32, %arg1: i32, %arg2: i32) -> (i32, i32, i32, i32) {
    %c0_i32 = arith.constant 0 : i32
    %c0_i32_0 = arith.constant 0 : i32
    %c0_i32_1 = arith.constant 0 : i32
    return %arg0, %arg1, %c0_i32, %c0_i32_0 : i32, i32, i32, i32
  }
}

</mosaic_0001>

<llo_original>
// kernel: tpu_custom_call.1
$region0: #{tpu_custom_call.1}
  #allocation0 [shape = 'u32[]', space=smem, size = 0x4, offset = 0x4, fixed_abs, tag = 'smem constant byte address 0x4 - core index']
  #allocation1 [shape = 'u32[72,128]{1,0:T(1,128)}', space=vmem, size = 0x9000, scoped, tag = 'internal scratch']
  %s0 = inlined_call_operand.hbm [shape: f32[2,4,1280], index: 0, kind: input, shape index: {}]
  %s1 = inlined_call_operand.hbm [shape: s32[2,1,1280], index: 1, kind: input, shape index: {}]
  %s2 = inlined_call_operand.hbm [shape: f32[2,2,8,8], index: 2, kind: output, shape index: {}]
  %s3 = sld [smem:[#allocation0]]
  $region53: #{tpu_custom_call.1} parent=0
    _
  %s5 = ssub.s32 1, %s3
  %s6 = scalar_select 0, %s5, %s3
  $region1: #{tpu_custom_call.1} parent=0
    #allocation2 [shape = 'u8[16384]{0}', space=vmem, size = 0x4000, scoped, tag = 'input window, operand 0']
    #allocation3 [shape = 's32[2]{0}', space=sflag, size = 0x8, scoped, tag = 'scoped memory for tpu_custom_call.1']
    #allocation4 [shape = 's32[2]{0}', space=sflag, size = 0x8, scoped, tag = 'scoped memory for tpu_custom_call.1']
    #allocation5 [shape = 'u8[4096]{0}', space=vmem, size = 0x1000, scoped, tag = 'input window, operand 1']
    #allocation6 [shape = 's32[2]{0}', space=sflag, size = 0x8, scoped, tag = 'scoped memory for tpu_custom_call.1']
    #allocation7 [shape = 'u8[8192]{0}', space=vmem, size = 0x2000, scoped, tag = 'output window, operand 0']
    %7 = vsyncpa [#allocation3], 0
    %s8 = scalar_lea.sflag [#allocation3], 1
    %9 = vsyncpa %s8, 0
    %10 = vsyncpa [#allocation6], 0
    %s11 = scalar_lea.sflag [#allocation6], 1
    %12 = vsyncpa %s11, 0
    %13 = vsyncpa [#allocation4], 0
    %s14 = scalar_lea.sflag [#allocation4], 1
    %15 = vsyncpa %s14, 0
    loop: start=0, step=1, limit=10
    $region2: #{tpu_custom_call.1} parent=1 // loop_pre_header
      _
    $region3: #{tpu_custom_call.1} parent=1 // loop_header
      %s17 = sphi 0, %s21
      %p18 = scmp.ge.s32.totalorder %s17, 10
      %s24 = sphi 0, %s43
      %s25 = sphi 0, %s39
      %s26 = sphi 0, %s35
      %s27 = sphi 0, %s24
      %s28 = sphi 0, %s25
      %s29 = sphi 0, %s26
      %s30 = sphi 0, %s27
      %s31 = sphi 0, %s28
      %s32 = sphi 0, %s29
      %s56 = sphi 0, %s58
      %s59 = sphi 0, %s56
      %s60 = sphi 0, %s59
      %s76 = sphi 0, %s60
      %s92 = sphi 0, %s94
      %s95 = sphi 0, %s92
      %s96 = sphi 0, %s95
      %s112 = sphi 0, %s96
      %s120 = sphi 0, %s122
      %s123 = sphi 0, %s120
      %s124 = sphi 0, %s123
      %s140 = sphi 0, %s124
    $region4: #{tpu_custom_call.1} parent=1 // loop_header_branch
      %20 = sbr.rel (%p18) target = $region8
    $region5: #{tpu_custom_call.1} parent=1 // loop_body
      %s22 = ssub.s32 %s17, 1
      %s23 = ssub.s32 %s17, 2
      %s33 = sadd.s32 1, %s26
      %p34 = scmp.ge.s32.totalorder %s33, 2
      %s35 = scalar_select %p34, 0, %s33
      %s36 = sadd.s32 1, %s25
      %s37 = scalar_select %p34, %s36, %s25
      %p38 = scmp.ge.s32.totalorder %s37, 2
      %s39 = scalar_select %p38, 0, %s37
      %s40 = sadd.s32 1, %s24
      %s41 = scalar_select %p38, %s40, %s24
      %p42 = scmp.ge.s32.totalorder %s41, 2
      %s43 = scalar_select %p42, 0, %s41
      %s44 = smul.u32 %s25, 2
      %s45 = sadd.s32 %s44, %s26
      %p46 = scmp.lt.s32.totalorder %s45, 2
      %s47 = scalar_select %p46, %s45, 2
      %s48 = smul.u32 %s39, 2
      %s49 = sadd.s32 %s48, %s35
      %p50 = scmp.lt.s32.totalorder %s49, 2
      %s51 = scalar_select %p50, %s49, 2
      %s52 = ssub.s32 %s24, %s43
      %s53 = ssub.s32 %s47, %s51
      %s54 = sor.u32 %s52, %s53
      %p55 = scmp.eq.s32.totalorder %s54, 0
      %s57 = sadd.s32 %s56, 1
      %s58 = scalar_select %p55, %s56, %s57
      %p61 = pneg %p55
      %p62 = scmp.eq.s32.totalorder %s17, 7
      %p63 = por %p61, %p62
      %p64 = scmp.ne.s32.totalorder %s56, %s59
      %p65 = scmp.eq.s32.totalorder %s17, 0
      %p66 = por %p64, %p65
      %p67 = scmp.ne.s32.totalorder %s56, %s59
      %p68 = scmp.eq.s32.totalorder %s22, 7
      %p69 = por %p67, %p68
      %p70 = scmp.ne.s32.totalorder %s59, %s60
      %p71 = scmp.eq.s32.totalorder %s22, 0
      %p72 = por %p70, %p71
      %p73 = scmp.ne.s32.totalorder %s59, %s60
      %p74 = scmp.eq.s32.totalorder %s23, 7
      %p75 = por %p73, %p74
      %p77 = scmp.ne.s32.totalorder %s60, %s76
      %p78 = scmp.eq.s32.totalorder %s23, 0
      %p79 = por %p77, %p78
      %s80 = smul.u32 %s25, 2
      %s81 = sadd.s32 %s80, %s26
      %p82 = scmp.lt.s32.totalorder %s81, 2
      %s83 = scalar_select %p82, %s81, 2
      %s84 = smul.u32 %s39, 2
      %s85 = sadd.s32 %s84, %s35
      %p86 = scmp.lt.s32.totalorder %s85, 2
      %s87 = scalar_select %p86, %s85, 2
      %s88 = ssub.s32 %s24, %s43
      %s89 = ssub.s32 %s83, %s87
      %s90 = sor.u32 %s88, %s89
      %p91 = scmp.eq.s32.totalorder %s90, 0
      %s93 = sadd.s32 %s92, 1
      %s94 = scalar_select %p91, %s92, %s93
      %p97 = pneg %p91
      %p98 = scmp.eq.s32.totalorder %s17, 7
      %p99 = por %p97, %p98
      %p100 = scmp.ne.s32.totalorder %s92, %s95
      %p101 = scmp.eq.s32.totalorder %s17, 0
      %p102 = por %p100, %p101
      %p103 = scmp.ne.s32.totalorder %s92, %s95
      %p104 = scmp.eq.s32.totalorder %s22, 7
      %p105 = por %p103, %p104
      %p106 = scmp.ne.s32.totalorder %s95, %s96
      %p107 = scmp.eq.s32.totalorder %s22, 0
      %p108 = por %p106, %p107
      %p109 = scmp.ne.s32.totalorder %s95, %s96
      %p110 = scmp.eq.s32.totalorder %s23, 7
      %p111 = por %p109, %p110
      %p113 = scmp.ne.s32.totalorder %s96, %s112
      %p114 = scmp.eq.s32.totalorder %s23, 0
      %p115 = por %p113, %p114
      %s116 = ssub.s32 %s24, %s43
      %s117 = ssub.s32 %s25, %s39
      %s118 = sor.u32 %s116, %s117
      %p119 = scmp.eq.s32.totalorder %s118, 0
      %s121 = sadd.s32 %s120, 1
      %s122 = scalar_select %p119, %s120, %s121
      %p125 = pneg %p119
      %p126 = scmp.eq.s32.totalorder %s17, 7
      %p127 = por %p125, %p126
      %p128 = scmp.ne.s32.totalorder %s120, %s123
      %p129 = scmp.eq.s32.totalorder %s17, 0
      %p130 = por %p128, %p129
      %p131 = scmp.ne.s32.totalorder %s120, %s123
      %p132 = scmp.eq.s32.totalorder %s22, 7
      %p133 = por %p131, %p132
      %p134 = scmp.ne.s32.totalorder %s123, %s124
      %p135 = scmp.eq.s32.totalorder %s22, 0
      %p136 = por %p134, %p135
      %p137 = scmp.ne.s32.totalorder %s123, %s124
      %p138 = scmp.eq.s32.totalorder %s23, 7
      %p139 = por %p137, %p138
      %p141 = scmp.ne.s32.totalorder %s124, %s140
      %p142 = scmp.eq.s32.totalorder %s23, 0
      %p143 = por %p141, %p142
      %p144 = scmp.le.s32.totalorder 1, %s17
      %p145 = scmp.lt.s32.totalorder %s17, 9
      %p146 = pnand %p144, %p145
      %p147 = pneg %p146
      // Predicated region
      $region9: #{tpu_custom_call.1} parent=5 // pred_check
        _
      $region10: #{tpu_custom_call.1} parent=5 // pred_check_branch
        %149 = sbr.rel (%p146) target = $region12
      $region11: #{tpu_custom_call.1} parent=5 // pred_region
        %s150 = ssub.s32 %s17, 1
      $region12: #{tpu_custom_call.1} parent=5 // pred_fallthru
        _
      %p151 = scmp.lt.s32.totalorder %s17, 8
      // Predicated region
      $region13: #{tpu_custom_call.1} parent=5 // pred_check
        %p152 = pneg %p151
      $region14: #{tpu_custom_call.1} parent=5 // pred_check_branch
        %154 = sbr.rel (%p152) target = $region16
      $region15: #{tpu_custom_call.1} parent=5 // pred_region
        // Predicated region
        $region17: #{tpu_custom_call.1} parent=15 // pred_check
          %p155 = pneg %p66
        $region18: #{tpu_custom_call.1} parent=15 // pred_check_branch
          %157 = sbr.rel (%p155) target = $region20
        $region19: #{tpu_custom_call.1} parent=15 // pred_region
          %s158 = sand.u32 %s56, 1
          %s159 = scalar_lea.sflag [#allocation3], %s158
          %s160 = sand.u32 %s56, 1
          %s161 = smul.addr %s160, 16
          %s162 = scalar_lea.vmem [#allocation2], %s161
          %s163 = smul.u32 %s25, 2
          %s164 = sadd.s32 %s163, %s26
          %p165 = scmp.lt.s32.totalorder %s164, 2
          %s166 = scalar_select %p165, %s164, 2
          %s167 = smul.u32 4, %s166
          %s168 = ssub.s32 10, %s167
          %p169 = scmp.lt.s32.totalorder %s168, 4
          %s170 = scalar_select %p169, %s168, 4
          %s171 = smul.u32 4, %s170
          %s172 = ssub.s32 16, %s171
          %s173 = sshll.u32 %s172, 4
          %174 = vsyncadd %s159, %s173
          %p175 = scmp.ne.s32.totalorder 0, %s171
          %s176 = smul.addr %s24, 10
          %s177 = sadd.s32 %s167, %s176
          %s178 = smul.addr %s177, 4
          %s179 = scalar_lea.hbm %s0, %s178
          %s180 = smul.u32 %s170, 4
          %s181 = sshll.u32 %s180, 4
          %s182 = sshll.u32 %s179, 4
          %s183 = int_to_ptr.hbm [resolvable:$true] %s182
          %s184 = sshll.u32 %s162, 4
          %s185 = int_to_ptr.vmem [resolvable:$true] %s184
          %187 = dma.hbm_to_vmem [thread:$0]  (%p175), %s183, %s181, %s185, %s159
        $region20: #{tpu_custom_call.1} parent=15 // pred_fallthru
          _
        // Predicated region
        $region21: #{tpu_custom_call.1} parent=15 // pred_check
          %p188 = pneg %p102
        $region22: #{tpu_custom_call.1} parent=15 // pred_check_branch
          %190 = sbr.rel (%p188) target = $region24
        $region23: #{tpu_custom_call.1} parent=15 // pred_region
          %s191 = sand.u32 %s92, 1
          %s192 = scalar_lea.sflag [#allocation6], %s191
          %s193 = sand.u32 %s92, 1
          %s194 = smul.addr %s193, 4
          %s195 = scalar_lea.vmem [#allocation5], %s194
          %s196 = smul.u32 %s25, 2
          %s197 = sadd.s32 %s196, %s26
          %p198 = scmp.lt.s32.totalorder %s197, 2
          %s199 = scalar_select %p198, %s197, 2
          %s200 = smul.u32 4, %s199
          %s201 = ssub.s32 10, %s200
          %p202 = scmp.lt.s32.totalorder %s201, 4
          %s203 = scalar_select %p202, %s201, 4
          %s204 = ssub.s32 4, %s203
          %s205 = sshll.u32 %s204, 4
          %206 = vsyncadd %s192, %s205
          %p207 = scmp.ne.s32.totalorder 0, %s203
          %s208 = smul.addr %s24, 10
          %s209 = sadd.s32 %s200, %s208
          %s210 = scalar_lea.hbm %s1, %s209
          %s211 = sshll.u32 %s203, 4
          %s212 = sshll.u32 %s210, 4
          %s213 = int_to_ptr.hbm [resolvable:$true] %s212
          %s214 = sshll.u32 %s195, 4
          %s215 = int_to_ptr.vmem [resolvable:$true] %s214
          %217 = dma.hbm_to_vmem [thread:$0]  (%p207), %s213, %s211, %s215, %s192
        $region24: #{tpu_custom_call.1} parent=15 // pred_fallthru
          _
      $region16: #{tpu_custom_call.1} parent=5 // pred_fallthru
        _
      %p218 = scmp.le.s32.totalorder 1, %s17
      %p219 = scmp.lt.s32.totalorder %s17, 9
      %p220 = pnand %p218, %p219
      %p221 = pneg %p220
      // Predicated region
      $region25: #{tpu_custom_call.1} parent=5 // pred_check
        _
      $region26: #{tpu_custom_call.1} parent=5 // pred_check_branch
        %223 = sbr.rel (%p220) target = $region28
      $region27: #{tpu_custom_call.1} parent=5 // pred_region
        %s224 = ssub.s32 %s17, 1
        %s225 = sand.u32 %s59, 1
        %s226 = scalar_lea.sflag [#allocation3], %s225
        %s227 = sand.u32 %s59, 1
        %s228 = smul.addr %s227, 16
        %s229 = scalar_lea.vmem [#allocation2], %s228
        // Predicated region
        $region29: #{tpu_custom_call.1} parent=27 // pred_check
          %p230 = pneg %p72
        $region30: #{tpu_custom_call.1} parent=27 // pred_check_branch
          %232 = sbr.rel (%p230) target = $region32
        $region31: #{tpu_custom_call.1} parent=27 // pred_region
          %234 = dma.done %s226, 256
        $region32: #{tpu_custom_call.1} parent=27 // pred_fallthru
          _
        %s235 = sand.u32 %s95, 1
        %s236 = scalar_lea.sflag [#allocation6], %s235
        %s237 = sand.u32 %s95, 1
        %s238 = smul.addr %s237, 4
        %s239 = scalar_lea.vmem [#allocation5], %s238
        // Predicated region
        $region33: #{tpu_custom_call.1} parent=27 // pred_check
          %p240 = pneg %p108
        $region34: #{tpu_custom_call.1} parent=27 // pred_check_branch
          %242 = sbr.rel (%p240) target = $region36
        $region35: #{tpu_custom_call.1} parent=27 // pred_region
          %244 = dma.done %s236, 64
        $region36: #{tpu_custom_call.1} parent=27 // pred_fallthru
          _
        %s245 = sand.u32 %s59, 1
        %s246 = scalar_lea.sflag [#allocation3], %s245
        %s247 = sand.u32 %s59, 1
        %s248 = smul.addr %s247, 16
        %s249 = scalar_lea.vmem [#allocation2], %s248
        %p250 = pneg %p72
        %p251 = pneg %p69
        %s252 = sand.u32 %s95, 1
        %s253 = scalar_lea.sflag [#allocation6], %s252
        %s254 = sand.u32 %s95, 1
        %s255 = smul.addr %s254, 4
        %s256 = scalar_lea.vmem [#allocation5], %s255
        %p257 = pneg %p108
        %p258 = pneg %p105
        %p259 = pneg %p136
        %p260 = pneg %p133
        %s261 = sand.u32 %s123, 1
        %s262 = scalar_lea.sflag [#allocation4], %s261
        %s263 = sand.u32 %s123, 1
        %s264 = smul.addr %s263, 8
        %s265 = scalar_lea.vmem [#allocation7], %s264
        %s266 = smul.u32 %s28, 2
        %s267 = sadd.s32 %s266, %s29
        %p268 = scmp.lt.s32.totalorder %s267, 2
        %s269 = scalar_select %p268, %s267, 2
        %s270 = smul.u32 4, %s269
        %s271 = ssub.s32 10, %s270
        %p272 = scmp.lt.s32.totalorder %s271, 4
        %s273 = scalar_select %p272, %s271, 4
        %s274 = smul.u32 4, %s273
        %s275 = smul.u32 %s28, 2
        %s276 = sadd.s32 %s275, %s29
        %p277 = scmp.lt.s32.totalorder %s276, 2
        %s278 = scalar_select %p277, %s276, 2
        %s279 = smul.u32 4, %s278
        %s280 = ssub.s32 10, %s279
        %p281 = scmp.lt.s32.totalorder %s280, 4
        %s282 = scalar_select %p281, %s280, 4
        %p284 = scmp.eq.s32.totalorder %s29, 0
        // Predicated region
        $region37: #{tpu_custom_call.1} parent=27 // pred_check
          %p285 = pneg %p284
        $region38: #{tpu_custom_call.1} parent=27 // pred_check_branch
          %287 = sbr.rel (%p285) target = $region40
        $region39: #{tpu_custom_call.1} parent=27 // pred_region
          %vm288 = vcmask 64512
          %289 = vst.msk [vmem:[%s265] sm:$0xff] %vm288, 0.0
        $region40: #{tpu_custom_call.1} parent=27 // pred_fallthru
          _
        %v290 = vld [vmem:[%s229] sm:$0xff]
        %v291 = vld [vmem:[%s229 + $0x8] sm:$0xff]
        %v292 = vlaneseq
        %v293 = vshrl.u32 %v292, 7
        %296 = vst [vmem:[#allocation1] ss:$2 sm:$0xff] %v290
        %s297 = scalar_lea.vmem [#allocation1], 16
        %298 = vst [vmem:[%s297] ss:$2 sm:$0xff] %v291
        %v299 = vld.sshfl [vmem:[#allocation1] sm:$0xff pattern:$0x75316420]
        %v300 = vld.sshfl [vmem:[#allocation1 + $0x8] sm:$0xff pattern:$0x75316420]
        %v301 = vld.sshfl [vmem:[#allocation1 + $0x10] sm:$0xff pattern:$0x75316420]
        %v302 = vld.sshfl [vmem:[#allocation1 + $0x18] sm:$0xff pattern:$0x75316420]
        %vm307 = vcmask 1043456
        %v308 = vsel %vm307, %v299, -inf
        %v309 = vrot.slane %v308, 4
        %v310 = vmax.f32 %v308, %v309
        %v311 = vrot.slane %v310, 2
        %v312 = vmax.f32 %v310, %v311
        %v313 = vrot.slane %v312, 1
        %v314 = vmax.f32 %v312, %v313
        %v315 = vsel %vm307, %v300, -inf
        %v316 = vrot.slane %v315, 4
        %v317 = vmax.f32 %v315, %v316
        %v318 = vrot.slane %v317, 2
        %v319 = vmax.f32 %v317, %v318
        %v320 = vrot.slane %v319, 1
        %v321 = vmax.f32 %v319, %v320
        %v322 = vsel %vm307, %v301, -inf
        %v323 = vrot.slane %v322, 4
        %v324 = vmax.f32 %v322, %v323
        %v325 = vrot.slane %v324, 2
        %v326 = vmax.f32 %v324, %v325
        %v327 = vrot.slane %v326, 1
        %v328 = vmax.f32 %v326, %v327
        %v329 = vsel %vm307, %v302, -inf
        %v330 = vrot.slane %v329, 4
        %v331 = vmax.f32 %v329, %v330
        %v332 = vrot.slane %v331, 2
        %v333 = vmax.f32 %v331, %v332
        %v334 = vrot.slane %v333, 1
        %v335 = vmax.f32 %v333, %v334
        %v340 = vrot.slane %v321, 4
        %v341 = vrot.slane %v335, 4
        %v342 = vsel %vm307, %v314, %v340
        %v343 = vsel %vm307, %v328, %v341
        %vm346 = vcmp.eq.f32.partialorder %v290, %v342
        %vm347 = vcmp.eq.f32.partialorder %v291, %v343
        %v349 = vunpack.c.l.s4 839922192
        %v350 = vunpack.c.0.s8 %v349
        %v351 = vperm.slane %v293, %v350
        %v352 = vsel %vm346, %v351, 4
        %v353 = vsel %vm347, %v351, 4
        %354 = vst [vmem:[#allocation1] ss:$2 sm:$0xff] %v352
        %s355 = scalar_lea.vmem [#allocation1], 16
        %356 = vst [vmem:[%s355] ss:$2 sm:$0xff] %v353
        %v357 = vld.sshfl [vmem:[#allocation1] sm:$0xff pattern:$0x75316420]
        %v358 = vld.sshfl [vmem:[#allocation1 + $0x8] sm:$0xff pattern:$0x75316420]
        %v359 = vld.sshfl [vmem:[#allocation1 + $0x10] sm:$0xff pattern:$0x75316420]
        %v360 = vld.sshfl [vmem:[#allocation1 + $0x18] sm:$0xff pattern:$0x75316420]
        %v361 = vsel %vm307, %v357, 2147483647
        %v362 = vrot.slane %v361, 4
        %vm363 = vcmp.lt.s32.totalorder %v361, %v362
        %v364 = vsel %vm363, %v361, %v362
        %v365 = vrot.slane %v364, 2
        %vm366 = vcmp.lt.s32.totalorder %v364, %v365
        %v367 = vsel %vm366, %v364, %v365
        %v368 = vrot.slane %v367, 1
        %vm369 = vcmp.lt.s32.totalorder %v367, %v368
        %v370 = vsel %vm369, %v367, %v368
        %v371 = vsel %vm307, %v358, 2147483647
        %v372 = vrot.slane %v371, 4
        %vm373 = vcmp.lt.s32.totalorder %v371, %v372
        %v374 = vsel %vm373, %v371, %v372
        %v375 = vrot.slane %v374, 2
        %vm376 = vcmp.lt.s32.totalorder %v374, %v375
        %v377 = vsel %vm376, %v374, %v375
        %v378 = vrot.slane %v377, 1
        %vm379 = vcmp.lt.s32.totalorder %v377, %v378
        %v380 = vsel %vm379, %v377, %v378
        %v381 = vsel %vm307, %v359, 2147483647
        %v382 = vrot.slane %v381, 4
        %vm383 = vcmp.lt.s32.totalorder %v381, %v382
        %v384 = vsel %vm383, %v381, %v382
        %v385 = vrot.slane %v384, 2
        %vm386 = vcmp.lt.s32.totalorder %v384, %v385
        %v387 = vsel %vm386, %v384, %v385
        %v388 = vrot.slane %v387, 1
        %vm389 = vcmp.lt.s32.totalorder %v387, %v388
        %v390 = vsel %vm389, %v387, %v388
        %v391 = vsel %vm307, %v360, 2147483647
        %v392 = vrot.slane %v391, 4
        %vm393 = vcmp.lt.s32.totalorder %v391, %v392
        %v394 = vsel %vm393, %v391, %v392
        %v395 = vrot.slane %v394, 2
        %vm396 = vcmp.lt.s32.totalorder %v394, %v395
        %v397 = vsel %vm396, %v394, %v395
        %v398 = vrot.slane %v397, 1
        %vm399 = vcmp.lt.s32.totalorder %v397, %v398
        %v400 = vsel %vm399, %v397, %v398
        %s401 = smul.u32 %s28, 2
        %s402 = sadd.s32 %s401, %s29
        %s403 = smul.u32 %s402, 512
        %v404 = vlaneseq
        %v405 = vand.u32 %v404, 127
        %v406 = vadd.s32 %v405, 128
        %v407 = vadd.s32 %v405, 256
        %v408 = vadd.s32 %v405, 384
        %v409 = vstv %s403
        %v410 = vadd.s32 %v409, %v405
        %v411 = vadd.s32 %v409, %v406
        %v412 = vadd.s32 %v409, %v407
        %v413 = vadd.s32 %v409, %v408
        %vm414 = vcmp.lt.s32.totalorder %v410, 1280
        %vm415 = vcmp.lt.s32.totalorder %v411, 1280
        %vm416 = vcmp.lt.s32.totalorder %v412, 1280
        %vm417 = vcmp.lt.s32.totalorder %v413, 1280
        %v418 = vld [vmem:[%s239] sm:$0xf]
        %vm419 = vcmp.eq.s32.totalorder %v370, %v293
        %vm420 = vcmp.eq.s32.totalorder %v380, %v293
        %vm421 = vcmp.eq.s32.totalorder %v390, %v293
        %vm422 = vcmp.eq.s32.totalorder %v400, %v293
        %v423 = vsel %vm414, 1, 0
        %v424 = vsel %vm415, 1, 0
        %v425 = vsel %vm416, 1, 0
        %v426 = vsel %vm417, 1, 0
        %vm427 = vcmp.eq.s32.totalorder %v423, 1
        %vm428 = vcmp.eq.s32.totalorder %v424, 1
        %vm429 = vcmp.eq.s32.totalorder %v425, 1
        %vm430 = vcmp.eq.s32.totalorder %v426, 1
        %vm431 = vmand %vm419, %vm427
        %vm432 = vmand %vm420, %vm428
        %vm433 = vmand %vm421, %vm429
        %vm434 = vmand %vm422, %vm430
        %v435 = vsel %vm431, 1, 0
        %v436 = vsel %vm432, 1, 0
        %v437 = vsel %vm433, 1, 0
        %v438 = vsel %vm434, 1, 0
        %v439 = vcvt.s32.f32 %v435
        %v440 = vcvt.s32.f32 %v436
        %v441 = vcvt.s32.f32 %v437
        %v442 = vcvt.s32.f32 %v438
        %v443 = vpack.c.bf16 %v439, %v439
        %v444 = vpack.c.bf16 %v440, %v440
        %v445 = vpack.c.bf16 %v441, %v441
        %v446 = vpack.c.bf16 %v442, %v442
        %v447 = vperm.slane %v418, 0
        %v448 = vperm.slane %v418, 1
        %v449 = vperm.slane %v418, 2
        %v450 = vperm.slane %v418, 3
        %vm451 = vcmp.eq.s32.totalorder %v447, %v293
        %vm452 = vcmp.eq.s32.totalorder %v448, %v293
        %vm453 = vcmp.eq.s32.totalorder %v449, %v293
        %vm454 = vcmp.eq.s32.totalorder %v450, %v293
        %vm455 = vmand %vm451, %vm427
        %vm456 = vmand %vm452, %vm428
        %vm457 = vmand %vm453, %vm429
        %vm458 = vmand %vm454, %vm430
        %v459 = vsel %vm455, 1, 0
        %v460 = vsel %vm456, 1, 0
        %v461 = vsel %vm457, 1, 0
        %v462 = vsel %vm458, 1, 0
        %v463 = vcvt.s32.f32 %v459
        %v464 = vcvt.s32.f32 %v460
        %v465 = vcvt.s32.f32 %v461
        %v466 = vcvt.s32.f32 %v462
        %v467 = vpack.c.bf16 %v463, %v463
        %v468 = vpack.c.bf16 %v464, %v464
        %v469 = vpack.c.bf16 %v465, %v465
        %v470 = vpack.c.bf16 %v466, %v466
        %v471 = vld [vmem:[%s265] sm:$0xff]
        %472 = vmatpush.bf16.xpose.msra.mxu0 0
        %473 = vmatpush.bf16.xpose.msra.mxu0 0
        %474 = vmatpush.bf16.xpose.msra.mxu0 0
        %475 = vmatpush.bf16.xpose.msra.mxu0 0
        %476 = vmatpush.bf16.xpose.msra.mxu0 0
        %477 = vmatpush.bf16.xpose.msra.mxu0 0
        %478 = vmatpush.bf16.xpose.msra.mxu0 0
        %479 = vmatpush.bf16.xpose.msra.mxu0 %v467
        %480 = vmatmul.bf16.gmra.mxu0 %v443
        %v481 = vpop.f32.mrf.mxu0
        %v482 = vadd.f32 0.0, %v481
        %v483 = vpop.f32.mrf.mxu0
        %484 = vdwg.mxu0
        %485 = vmatpush.bf16.xpose.msra.mxu0 0
        %486 = vmatpush.bf16.xpose.msra.mxu0 0
        %487 = vmatpush.bf16.xpose.msra.mxu0 0
        %488 = vmatpush.bf16.xpose.msra.mxu0 0
        %489 = vmatpush.bf16.xpose.msra.mxu0 0
        %490 = vmatpush.bf16.xpose.msra.mxu0 0
        %491 = vmatpush.bf16.xpose.msra.mxu0 0
        %492 = vmatpush.bf16.xpose.msra.mxu0 %v468
        %493 = vmatmul.bf16.gmra.mxu0 %v444
        %v494 = vpop.f32.mrf.mxu0
        %v495 = vadd.f32 %v482, %v494
        %v496 = vpop.f32.mrf.mxu0
        %497 = vdwg.mxu0
        %498 = vmatpush.bf16.xpose.msra.mxu0 0
        %499 = vmatpush.bf16.xpose.msra.mxu0 0
        %500 = vmatpush.bf16.xpose.msra.mxu0 0
        %501 = vmatpush.bf16.xpose.msra.mxu0 0
        %502 = vmatpush.bf16.xpose.msra.mxu0 0
        %503 = vmatpush.bf16.xpose.msra.mxu0 0
        %504 = vmatpush.bf16.xpose.msra.mxu0 0
        %505 = vmatpush.bf16.xpose.msra.mxu0 %v469
        %506 = vmatmul.bf16.gmra.mxu0 %v445
        %v507 = vpop.f32.mrf.mxu0
        %v508 = vadd.f32 %v495, %v507
        %v509 = vpop.f32.mrf.mxu0
        %510 = vdwg.mxu0
        %511 = vmatpush.bf16.xpose.msra.mxu0 0
        %512 = vmatpush.bf16.xpose.msra.mxu0 0
        %513 = vmatpush.bf16.xpose.msra.mxu0 0
        %514 = vmatpush.bf16.xpose.msra.mxu0 0
        %515 = vmatpush.bf16.xpose.msra.mxu0 0
        %516 = vmatpush.bf16.xpose.msra.mxu0 0
        %517 = vmatpush.bf16.xpose.msra.mxu0 0
        %518 = vmatpush.bf16.xpose.msra.mxu0 %v470
        %519 = vmatmul.bf16.gmra.mxu0 %v446
        %v520 = vpop.f32.mrf.mxu0
        %v521 = vadd.f32 %v508, %v520
        %v522 = vpop.f32.mrf.mxu0
        %523 = vdwg.mxu0
        %v524 = vadd.f32 %v471, %v521
        %vm525 = vcmask 64512
        %526 = vst.msk [vmem:[%s265] sm:$0xff] %vm525, %v524
        %s527 = sand.u32 %s123, 1
        %s528 = scalar_lea.sflag [#allocation4], %s527
        %s529 = sand.u32 %s123, 1
        %s530 = smul.addr %s529, 8
        %s531 = scalar_lea.vmem [#allocation7], %s530
        // Predicated region
        $region41: #{tpu_custom_call.1} parent=27 // pred_check
          %p532 = pneg %p133
        $region42: #{tpu_custom_call.1} parent=27 // pred_check_branch
          %534 = sbr.rel (%p532) target = $region44
        $region43: #{tpu_custom_call.1} parent=27 // pred_region
          %536 = vsyncadd %s528, 0
          %s537 = smul.addr %s27, 2
          %s538 = sadd.s32 %s28, %s537
          %s539 = smul.addr %s538, 8
          %s540 = scalar_lea.hbm %s2, %s539
          %s542 = sshll.u32 %s531, 4
          %s543 = int_to_ptr.vmem [resolvable:$true] %s542
          %s544 = sshll.u32 %s540, 4
          %s545 = int_to_ptr.hbm [resolvable:$true] %s544
          %547 = dma.vmem_to_hbm [thread:$0]  %s543, 128, %s545, %s528
        $region44: #{tpu_custom_call.1} parent=27 // pred_fallthru
          _
      $region28: #{tpu_custom_call.1} parent=5 // pred_fallthru
        _
      %p548 = scmp.le.s32.totalorder 2, %s17
      // Predicated region
      $region45: #{tpu_custom_call.1} parent=5 // pred_check
        %p549 = pneg %p548
      $region46: #{tpu_custom_call.1} parent=5 // pred_check_branch
        %551 = sbr.rel (%p549) target = $region48
      $region47: #{tpu_custom_call.1} parent=5 // pred_region
        %s552 = ssub.s32 %s17, 2
        // Predicated region
        $region49: #{tpu_custom_call.1} parent=47 // pred_check
          %p553 = pneg %p139
        $region50: #{tpu_custom_call.1} parent=47 // pred_check_branch
          %555 = sbr.rel (%p553) target = $region52
        $region51: #{tpu_custom_call.1} parent=47 // pred_region
          %s556 = sand.u32 %s124, 1
          %s557 = scalar_lea.sflag [#allocation4], %s556
          %s558 = sand.u32 %s124, 1
          %s559 = smul.addr %s558, 8
          %s560 = scalar_lea.vmem [#allocation7], %s559
          %562 = dma.done %s557, 128
        $region52: #{tpu_custom_call.1} parent=47 // pred_fallthru
          _
      $region48: #{tpu_custom_call.1} parent=5 // pred_fallthru
        _
    $region6: #{tpu_custom_call.1} parent=1 // loop_footer
      %s21 = sadd.s32 1, %s17
    $region7: #{tpu_custom_call.1} parent=1 // loop_footer_branch
      %16 = sbr.rel target = $region3
    $region8: #{tpu_custom_call.1} parent=1 // loop_exit
      _
    %563 = vsyncpa [#allocation3], 1
    %s564 = scalar_lea.sflag [#allocation3], 1
    %565 = vsyncpa %s564, 1
    %566 = vsyncpa [#allocation6], 1
    %s567 = scalar_lea.sflag [#allocation6], 1
    %568 = vsyncpa %s567, 1
    %569 = vsyncpa [#allocation4], 1
    %s570 = scalar_lea.sflag [#allocation4], 1
    %571 = vsyncpa %s570, 1

</llo_original>
